<compile_context>
chip_gen: v7x
topology: tpu7x:2x2x1
jax: 0.10.0
libtpu: 0.0.40
codegen_flags: <defaults>
</compile_context>

<pallas_src>
import jax
import jax.numpy as jnp
import numpy as np
from jax.experimental import pallas as pl
from jax.experimental.pallas import tpu as pltpu


_ACT = {
    "relu": lambda x: jnp.maximum(x, 0.0),
    "tanh": jnp.tanh,
    "gelu": jax.nn.gelu,
}


def _tile_n(n, cap=1024):
    """Largest multiple-of-128 tile <= cap that divides n exactly (else whole axis)."""
    if n % 128 != 0:
        return n
    tn = min(n, cap)
    while n % tn != 0:
        tn -= 128
    return tn


# --------------------------------- kernels -----------------------------------

def _make_no_trunk_kernel(n_branch, act):
    """trunk is None: out = branch(x_func) @ pod_basis.T (basis pre-transposed)."""
    def kernel(*refs):
        i = 0
        h = refs[i][...]; i += 1                               # x_func (B, m)
        for l in range(n_branch):                              # branch FNN
            w, b = refs[i], refs[i + 1]; i += 2
            h = jnp.dot(h, w[...], preferred_element_type=jnp.float32) + b[...]
            if l < n_branch - 1:
                h = act(h)
        basis_t = refs[i]; i += 1                              # (modes, tn)
        out_ref = refs[i]
        # einsum('bi,ni->bn') with basis pre-transposed -> lane-dense output.
        out_ref[...] = jnp.dot(h, basis_t[...],
                               preferred_element_type=jnp.float32)
    return kernel


def _make_with_trunk_kernel(n_branch, n_trunk, act):
    """trunk present: out = bf @ concat([basis, act(trunk(x_loc))], 1).T + b."""
    def kernel(*refs):
        i = 0
        h = refs[i][...]; i += 1                               # x_func (B, m)
        for _ in range(n_branch - 1):                          # branch hidden layers
            w, b = refs[i], refs[i + 1]; i += 2
            h = act(jnp.dot(h, w[...], preferred_element_type=jnp.float32)
                    + b[...])
        # Split branch output head (host-side split -> no lane slicing here).
        bw_p, bb_p, bw_t, bb_t = refs[i], refs[i + 1], refs[i + 2], refs[i + 3]
        i += 4
        bf_pod = jnp.dot(h, bw_p[...],
                         preferred_element_type=jnp.float32) + bb_p[...]
        bf_trk = jnp.dot(h, bw_t[...],
                         preferred_element_type=jnp.float32) + bb_t[...]

        # Trunk FNN, transposed: every intermediate is (width, tn) lane-dense.
        # Hidden layers get `act`; the output layer also gets the outer
        # self.activation -> act on every layer.
        g = refs[i][...]; i += 1                               # x_loc^T (d_loc, tn)
        for _ in range(n_trunk):
            wt, bt = refs[i], refs[i + 1]; i += 2
            g = act(jnp.dot(wt[...], g,
                            preferred_element_type=jnp.float32) + bt[...])

        basis_t, b0_ref, out_ref = refs[i], refs[i + 1], refs[i + 2]
        # einsum('bi,ni->bn', bf, concat([basis, t], 1)) + b
        #   == bf_pod @ basis.T + bf_trk @ t.T + b  (all natural orientation)
        out_ref[...] = (jnp.dot(bf_pod, basis_t[...],
                                preferred_element_type=jnp.float32)
                        + jnp.dot(bf_trk, g,
                                  preferred_element_type=jnp.float32)
                        + b0_ref[0])
    return kernel


# -------------------------------- wrappers -----------------------------------

def pod_deeponet_no_trunk(x_func, pod_basis, branch_params,
                          activation="relu", tile_n=None):
    """SimpleDarcyDeepONet path (trunk is None)."""
    B, m = x_func.shape
    N, modes = pod_basis.shape
    basis_t = pod_basis.T                        # one-time host transpose (modes, N)
    tn = _tile_n(N) if tile_n is None else tile_n
    grid = (pl.cdiv(N, tn),)
    const = lambda shape: pl.BlockSpec(shape, lambda j: (0, 0))

    args, in_specs = [x_func], [const((B, m))]
    for w, b in branch_params:
        args += [w, b]
        in_specs += [const(w.shape), const(b.shape)]
    args.append(basis_t)
    in_specs.append(pl.BlockSpec((modes, tn), lambda j: (0, j)))

    kernel = _make_no_trunk_kernel(len(branch_params), _ACT[activation])
    return pl.pallas_call(
        kernel,
        out_shape=jax.ShapeDtypeStruct((B, N), jnp.float32),
        grid=grid,
        in_specs=in_specs,
        out_specs=pl.BlockSpec((B, tn), lambda j: (0, j)),
        compiler_params=pltpu.CompilerParams(
            dimension_semantics=("parallel",)),   # v7x: split N tiles across TCs
    )(*args)


def pod_deeponet_with_trunk(x_func, x_loc, pod_basis, branch_params,
                            trunk_params, b0, activation="relu", tile_n=None):
    """General CustomPODDeepONet path (trunk present)."""
    B, m = x_func.shape
    N, modes = pod_basis.shape
    pt = trunk_params[-1][0].shape[1]
    bw_last, bb_last = branch_params[-1]
    assert bw_last.shape[1] == modes + pt

    # One-time host-side layout plumbing (outside the hot kernel):
    basis_t = pod_basis.T                                  # (modes, N)
    x_loc_t = x_loc.T                                      # (d_loc, N)
    bw_p, bw_t = bw_last[:, :modes], bw_last[:, modes:]    # split output head
    bb_p, bb_t = bb_last[:, :modes], bb_last[:, modes:]
    trunk_t = [(w.T, b.T) for (w, b) in trunk_params]      # (out,in), (out,1)

    tn = _tile_n(N) if tile_n is None else tile_n
    grid = (pl.cdiv(N, tn),)
    const = lambda shape: pl.BlockSpec(shape, lambda j: (0, 0))
    tiled = lambda rows: pl.BlockSpec((rows, tn), lambda j: (0, j))

    args, in_specs = [x_func], [const((B, m))]
    for w, b in branch_params[:-1]:
        args += [w, b]
        in_specs += [const(w.shape), const(b.shape)]
    args += [bw_p, bb_p, bw_t, bb_t]
    in_specs += [const(bw_p.shape), const(bb_p.shape),
                 const(bw_t.shape), const(bb_t.shape)]
    args.append(x_loc_t)
    in_specs.append(tiled(x_loc_t.shape[0]))
    for wt, bt in trunk_t:
        args += [wt, bt]
        in_specs += [const(wt.shape), const(bt.shape)]
    args.append(basis_t)
    in_specs.append(tiled(modes))
    args.append(b0)
    in_specs.append(pl.BlockSpec(memory_space=pltpu.MemorySpace.SMEM))  # scalar b

    kernel = _make_with_trunk_kernel(len(branch_params), len(trunk_params),
                                     _ACT[activation])
    return pl.pallas_call(
        kernel,
        out_shape=jax.ShapeDtypeStruct((B, N), jnp.float32),
        grid=grid,
        in_specs=in_specs,
        out_specs=pl.BlockSpec((B, tn), lambda j: (0, j)),
        compiler_params=pltpu.CompilerParams(
            dimension_semantics=("parallel",)),
    )(*args)


# ----------------------- deterministic parameter setup -----------------------

def init_fnn(layer_sizes, key):
    params = []
    for fan_in, fan_out in zip(layer_sizes[:-1], layer_sizes[1:]):
        key, wk, bk = jax.random.split(key, 3)
        w = jax.random.normal(wk, (fan_in, fan_out), jnp.float32) / np.sqrt(fan_in)
        b = 0.01 * jax.random.normal(bk, (1, fan_out), jnp.float32)
        params.append((w, b))
    return params


def _ref_fnn(x, params, act):
    for i, (w, b) in enumerate(params):
        x = x @ w + b
        if i < len(params) - 1:
            x = act(x)
    return x


# ----------------------------------- main ------------------------------------

if __name__ == "__main__":
    key = jax.random.PRNGKey(0)
    B, m, H, N = 4, 32, 64, 256         # batch, sensors, hidden, eval points
    modes, pt, d_loc = 16, 16, 2        # POD modes, trunk out width, coord dim
    k0, k1, k2, k3, k4, k5 = jax.random.split(key, 6)

    x_func = jax.random.normal(k0, (B, m), jnp.float32)
    pod_basis = jax.random.normal(k1, (N, modes), jnp.float32)

    # ---- case 1: trunk is None (SimpleDarcyDeepONet forward), relu branch ----
    branch_p = init_fnn([m, H, H, modes], k2)
    out1 = pod_deeponet_no_trunk(x_func, pod_basis, branch_p,
                                 activation="relu", tile_n=128)  # grid = (2,)
    jax.block_until_ready(out1)
    relu = lambda x: jnp.maximum(x, 0.0)
    ref1 = jnp.einsum('bi,ni->bn', _ref_fnn(x_func, branch_p, relu), pod_basis)
    np.testing.assert_allclose(np.asarray(out1), np.asarray(ref1),
                               rtol=1e-3, atol=1e-3)

    # ---- case 2: trunk present (general CustomPODDeepONet forward), tanh ----
    x_loc = jax.random.normal(k3, (N, d_loc), jnp.float32)
    branch2_p = init_fnn([m, H, H, modes + pt], k4)
    trunk_p = init_fnn([d_loc, H, H, H, pt], k5)     # deeper trunk like the spec default
    b0 = jnp.array([0.1], jnp.float32)               # Parameter(tensor(0.0)); nonzero to test add
    out2 = pod_deeponet_with_trunk(x_func, x_loc, pod_basis,
                                   branch2_p, trunk_p, b0,
                                   activation="tanh", tile_n=128)  # grid = (2,)
    jax.block_until_ready(out2)
    t_ref = jnp.tanh(_ref_fnn(x_loc, trunk_p, jnp.tanh))
    ref2 = jnp.einsum('bi,ni->bn', _ref_fnn(x_func, branch2_p, jnp.tanh),
                      jnp.concatenate([pod_basis, t_ref], axis=1)) + b0[0]
    np.testing.assert_allclose(np.asarray(out2), np.asarray(ref2),
                               rtol=1e-3, atol=1e-3)

    print("KERNEL_OK")
</pallas_src>

<mosaic_0001>
module attributes {stable_mosaic.version = 11 : i64} {
  func.func @kernel(%arg0: i32, %arg1: memref<4x32xf32, #tpu.memory_space<vmem>>, %arg2: memref<32x64xf32, #tpu.memory_space<vmem>>, %arg3: memref<1x64xf32, #tpu.memory_space<vmem>>, %arg4: memref<64x64xf32, #tpu.memory_space<vmem>>, %arg5: memref<1x64xf32, #tpu.memory_space<vmem>>, %arg6: memref<64x16xf32, #tpu.memory_space<vmem>>, %arg7: memref<1x16xf32, #tpu.memory_space<vmem>>, %arg8: memref<16x128xf32, #tpu.memory_space<vmem>>, %arg9: memref<4x128xf32, #tpu.memory_space<vmem>>) attributes {dimension_semantics = [#tpu.dimension_semantics<parallel>], iteration_bounds = array<i64: 2>, scalar_prefetch = 0 : i64, scratch_operands = 0 : i64, tpu.core_type = #tpu.core_type<tc>, window_params = [{pipeline_mode = #tpu.pipeline_mode<synchronous>, transform_indices = @transform_0, window_bounds = array<i64: 4, 32>}, {pipeline_mode = #tpu.pipeline_mode<synchronous>, transform_indices = @transform_1, window_bounds = array<i64: 32, 64>}, {pipeline_mode = #tpu.pipeline_mode<synchronous>, transform_indices = @transform_2, window_bounds = array<i64: 1, 64>}, {pipeline_mode = #tpu.pipeline_mode<synchronous>, transform_indices = @transform_3, window_bounds = array<i64: 64, 64>}, {pipeline_mode = #tpu.pipeline_mode<synchronous>, transform_indices = @transform_4, window_bounds = array<i64: 1, 64>}, {pipeline_mode = #tpu.pipeline_mode<synchronous>, transform_indices = @transform_5, window_bounds = array<i64: 64, 16>}, {pipeline_mode = #tpu.pipeline_mode<synchronous>, transform_indices = @transform_6, window_bounds = array<i64: 1, 16>}, {transform_indices = @transform_7, window_bounds = array<i64: 16, 128>}, {transform_indices = @transform_8, window_bounds = array<i64: 4, 128>}]} {
    %c0 = arith.constant 0 : index
    %c0_0 = arith.constant 0 : index
    %0 = vector.load %arg1[%c0, %c0_0] : memref<4x32xf32, #tpu.memory_space<vmem>>, vector<4x32xf32>
    %c0_1 = arith.constant 0 : index
    %c0_2 = arith.constant 0 : index
    %1 = vector.load %arg2[%c0_1, %c0_2] : memref<32x64xf32, #tpu.memory_space<vmem>>, vector<32x64xf32>
    %cst = arith.constant dense<0.000000e+00> : vector<4x64xf32>
    %2 = tpu.matmul %0, %1, %cst {dimension_numbers = #tpu.dot_dimension_numbers<[1], [0], [0], [1], [0, 0, 1, 1], [], []>} : vector<4x32xf32>, vector<32x64xf32>, vector<4x64xf32> -> vector<4x64xf32>
    %c0_3 = arith.constant 0 : index
    %c0_4 = arith.constant 0 : index
    %3 = vector.load %arg3[%c0_3, %c0_4] : memref<1x64xf32, #tpu.memory_space<vmem>>, vector<1x64xf32>
    %4 = vector.broadcast %3 : vector<1x64xf32> to vector<4x64xf32>
    %5 = arith.addf %2, %4 : vector<4x64xf32>
    %cst_5 = arith.constant 0.000000e+00 : f32
    %6 = vector.broadcast %cst_5 : f32 to vector<4x64xf32>
    %7 = arith.maximumf %5, %6 : vector<4x64xf32>
    %c0_6 = arith.constant 0 : index
    %c0_7 = arith.constant 0 : index
    %8 = vector.load %arg4[%c0_6, %c0_7] : memref<64x64xf32, #tpu.memory_space<vmem>>, vector<64x64xf32>
    %cst_8 = arith.constant dense<0.000000e+00> : vector<4x64xf32>
    %9 = tpu.matmul %7, %8, %cst_8 {dimension_numbers = #tpu.dot_dimension_numbers<[1], [0], [0], [1], [0, 0, 1, 1], [], []>} : vector<4x64xf32>, vector<64x64xf32>, vector<4x64xf32> -> vector<4x64xf32>
    %c0_9 = arith.constant 0 : index
    %c0_10 = arith.constant 0 : index
    %10 = vector.load %arg5[%c0_9, %c0_10] : memref<1x64xf32, #tpu.memory_space<vmem>>, vector<1x64xf32>
    %11 = vector.broadcast %10 : vector<1x64xf32> to vector<4x64xf32>
    %12 = arith.addf %9, %11 : vector<4x64xf32>
    %cst_11 = arith.constant 0.000000e+00 : f32
    %13 = vector.broadcast %cst_11 : f32 to vector<4x64xf32>
    %14 = arith.maximumf %12, %13 : vector<4x64xf32>
    %c0_12 = arith.constant 0 : index
    %c0_13 = arith.constant 0 : index
    %15 = vector.load %arg6[%c0_12, %c0_13] : memref<64x16xf32, #tpu.memory_space<vmem>>, vector<64x16xf32>
    %cst_14 = arith.constant dense<0.000000e+00> : vector<4x16xf32>
    %16 = tpu.matmul %14, %15, %cst_14 {dimension_numbers = #tpu.dot_dimension_numbers<[1], [0], [0], [1], [0, 0, 1, 1], [], []>} : vector<4x64xf32>, vector<64x16xf32>, vector<4x16xf32> -> vector<4x16xf32>
    %c0_15 = arith.constant 0 : index
    %c0_16 = arith.constant 0 : index
    %17 = vector.load %arg7[%c0_15, %c0_16] : memref<1x16xf32, #tpu.memory_space<vmem>>, vector<1x16xf32>
    %18 = vector.broadcast %17 : vector<1x16xf32> to vector<4x16xf32>
    %19 = arith.addf %16, %18 : vector<4x16xf32>
    %c0_17 = arith.constant 0 : index
    %c0_18 = arith.constant 0 : index
    %20 = vector.load %arg8[%c0_17, %c0_18] : memref<16x128xf32, #tpu.memory_space<vmem>>, vector<16x128xf32>
    %cst_19 = arith.constant dense<0.000000e+00> : vector<4x128xf32>
    %21 = tpu.matmul %19, %20, %cst_19 {dimension_numbers = #tpu.dot_dimension_numbers<[1], [0], [0], [1], [0, 0, 1, 1], [], []>} : vector<4x16xf32>, vector<16x128xf32>, vector<4x128xf32> -> vector<4x128xf32>
    %c0_20 = arith.constant 0 : index
    %c0_21 = arith.constant 0 : index
    %22 = vector.load %arg9[%c0_20, %c0_21] : memref<4x128xf32, #tpu.memory_space<vmem>>, vector<4x128xf32>
    tpu.vector_store %arg9[%c0_20, %c0_21], %21 {strides = array<i32>} : memref<4x128xf32, #tpu.memory_space<vmem>>, vector<4x128xf32>,
    return
  }
  func.func @transform_0(%arg0: i32) -> (i32, i32) {
    %c0_i32 = arith.constant 0 : i32
    %c0_i32_0 = arith.constant 0 : i32
    %c0_i32_1 = arith.constant 0 : i32
    return %c0_i32, %c0_i32_0 : i32, i32
  }
  func.func @transform_1(%arg0: i32) -> (i32, i32) {
    %c0_i32 = arith.constant 0 : i32
    %c0_i32_0 = arith.constant 0 : i32
    %c0_i32_1 = arith.constant 0 : i32
    return %c0_i32, %c0_i32_0 : i32, i32
  }
  func.func @transform_2(%arg0: i32) -> (i32, i32) {
    %c0_i32 = arith.constant 0 : i32
    %c0_i32_0 = arith.constant 0 : i32
    %c0_i32_1 = arith.constant 0 : i32
    return %c0_i32, %c0_i32_0 : i32, i32
  }
  func.func @transform_3(%arg0: i32) -> (i32, i32) {
    %c0_i32 = arith.constant 0 : i32
    %c0_i32_0 = arith.constant 0 : i32
    %c0_i32_1 = arith.constant 0 : i32
    return %c0_i32, %c0_i32_0 : i32, i32
  }
  func.func @transform_4(%arg0: i32) -> (i32, i32) {
    %c0_i32 = arith.constant 0 : i32
    %c0_i32_0 = arith.constant 0 : i32
    %c0_i32_1 = arith.constant 0 : i32
    return %c0_i32, %c0_i32_0 : i32, i32
  }
  func.func @transform_5(%arg0: i32) -> (i32, i32) {
    %c0_i32 = arith.constant 0 : i32
    %c0_i32_0 = arith.constant 0 : i32
    %c0_i32_1 = arith.constant 0 : i32
    return %c0_i32, %c0_i32_0 : i32, i32
  }
  func.func @transform_6(%arg0: i32) -> (i32, i32) {
    %c0_i32 = arith.constant 0 : i32
    %c0_i32_0 = arith.constant 0 : i32
    %c0_i32_1 = arith.constant 0 : i32
    return %c0_i32, %c0_i32_0 : i32, i32
  }
  func.func @transform_7(%arg0: i32) -> (i32, i32) {
    %c0_i32 = arith.constant 0 : i32
    %c0_i32_0 = arith.constant 0 : i32
    return %c0_i32, %arg0 : i32, i32
  }
  func.func @transform_8(%arg0: i32) -> (i32, i32) {
    %c0_i32 = arith.constant 0 : i32
    %c0_i32_0 = arith.constant 0 : i32
    return %c0_i32, %arg0 : i32, i32
  }
}

</mosaic_0001>

<llo_original>
// kernel: tpu_custom_call.1
$region0: #{tpu_custom_call.1}
  #allocation0 [shape = 'u32[]', space=smem, size = 0x4, offset = 0x4, fixed_abs, tag = 'smem constant byte address 0x4 - core index']
  #allocation1 [shape = 'u32[144,128]{1,0:T(1,128)}', space=vmem, size = 0x12000, scoped, tag = 'internal scratch']
  %s0 = inlined_call_operand.hbm [shape: f32[4,32], index: 0, kind: input, shape index: {}]
  %s1 = inlined_call_operand.hbm [shape: f32[32,64], index: 1, kind: input, shape index: {}]
  %s2 = inlined_call_operand.vmem [shape: f32[1,64], index: 2, kind: input, shape index: {}]
  %s3 = inlined_call_operand.vmem [shape: f32[64,64], index: 3, kind: input, shape index: {}]
  %s4 = inlined_call_operand.vmem [shape: f32[1,64], index: 4, kind: input, shape index: {}]
  %s5 = inlined_call_operand.vmem [shape: f32[64,16], index: 5, kind: input, shape index: {}]
  %s6 = inlined_call_operand.vmem [shape: f32[1,16], index: 6, kind: input, shape index: {}]
  %s7 = inlined_call_operand.vmem [shape: f32[16,256], index: 7, kind: input, shape index: {}]
  %s8 = inlined_call_operand.hbm [shape: f32[4,256], index: 8, kind: output, shape index: {}]
  %s9 = sld [smem:[#allocation0]]
  $region111: #{tpu_custom_call.1} parent=0
    _
  %s11 = ssub.s32 1, %s9
  %s12 = scalar_select 0, %s11, %s9
  $region1: #{tpu_custom_call.1} parent=0
    #allocation2 [shape = 'u8[2048]{0}', space=vmem, size = 0x800, scoped, tag = 'input window, operand 0, single buffered']
    #allocation3 [shape = 's32[2]{0}', space=sflag, size = 0x8, scoped, tag = 'scoped memory for tpu_custom_call.1']
    #allocation4 [shape = 's32[2]{0}', space=sflag, size = 0x8, scoped, tag = 'scoped memory for tpu_custom_call.1']
    #allocation5 [shape = 'u8[16384]{0}', space=vmem, size = 0x4000, scoped, tag = 'input window, operand 1, single buffered']
    #allocation6 [shape = 's32[1]{0}', space=sflag, size = 0x4, scoped, tag = 'scoped memory for tpu_custom_call.1']
    #allocation7 [shape = 'u8[16384]{0}', space=vmem, size = 0x4000, scoped, tag = 'input window, operand 7']
    #allocation8 [shape = 'u8[4096]{0}', space=vmem, size = 0x1000, scoped, tag = 'output window, operand 0']
    %13 = vsyncpa [#allocation3], 0
    %14 = vsyncpa [#allocation6], 0
    %15 = vsyncpa [#allocation4], 0
    %s16 = scalar_lea.sflag [#allocation4], 1
    %17 = vsyncpa %s16, 0
    loop: start=0, step=1, limit=4
    $region2: #{tpu_custom_call.1} parent=1 // loop_pre_header
      _
    $region3: #{tpu_custom_call.1} parent=1 // loop_header
      %s19 = sphi 0, %s23
      %p20 = scmp.ge.s32.totalorder %s19, 4
      %s27 = sphi 0, %s27
      %s29 = sphi 0, %s27
      %s30 = sphi 0, %s29
      %s44 = sphi 0, %s30
      %s48 = sphi 0, %s48
      %s50 = sphi 0, %s48
      %s51 = sphi 0, %s50
      %s65 = sphi 0, %s51
      %s69 = sphi 0, %s69
      %s71 = sphi 0, %s69
      %s72 = sphi 0, %s71
      %s86 = sphi 0, %s72
      %s90 = sphi 0, %s90
      %s92 = sphi 0, %s90
      %s93 = sphi 0, %s92
      %s107 = sphi 0, %s93
      %s111 = sphi 0, %s111
      %s113 = sphi 0, %s111
      %s114 = sphi 0, %s113
      %s128 = sphi 0, %s114
      %s132 = sphi 0, %s132
      %s134 = sphi 0, %s132
      %s135 = sphi 0, %s134
      %s149 = sphi 0, %s135
      %s153 = sphi 0, %s153
      %s155 = sphi 0, %s153
      %s156 = sphi 0, %s155
      %s170 = sphi 0, %s156
      %s176 = sphi 0, %s178
      %s179 = sphi 0, %s176
      %s180 = sphi 0, %s179
      %s196 = sphi 0, %s180
      %s202 = sphi 0, %s204
      %s205 = sphi 0, %s202
      %s206 = sphi 0, %s205
      %s222 = sphi 0, %s206
    $region4: #{tpu_custom_call.1} parent=1 // loop_header_branch
      %22 = sbr.rel (%p20) target = $region8
    $region5: #{tpu_custom_call.1} parent=1 // loop_body
      %s24 = ssub.s32 %s19, 1
      %s25 = ssub.s32 %s19, 2
      %s26 = sadd.s32 %s19, 1
      %s28 = sadd.s32 %s27, 1
      %p31 = scmp.eq.s32.totalorder %s19, 1
      %p32 = scmp.ne.s32.totalorder %s27, %s29
      %p33 = scmp.eq.s32.totalorder %s19, 0
      %p34 = por %p32, %p33
      %p35 = scmp.ne.s32.totalorder %s27, %s29
      %p36 = scmp.eq.s32.totalorder %s24, 1
      %p37 = por %p35, %p36
      %p38 = scmp.ne.s32.totalorder %s29, %s30
      %p39 = scmp.eq.s32.totalorder %s24, 0
      %p40 = por %p38, %p39
      %p41 = scmp.ne.s32.totalorder %s29, %s30
      %p42 = scmp.eq.s32.totalorder %s25, 1
      %p43 = por %p41, %p42
      %p45 = scmp.ne.s32.totalorder %s30, %s44
      %p46 = scmp.eq.s32.totalorder %s25, 0
      %p47 = por %p45, %p46
      %s49 = sadd.s32 %s48, 1
      %p52 = scmp.eq.s32.totalorder %s19, 1
      %p53 = scmp.ne.s32.totalorder %s48, %s50
      %p54 = scmp.eq.s32.totalorder %s19, 0
      %p55 = por %p53, %p54
      %p56 = scmp.ne.s32.totalorder %s48, %s50
      %p57 = scmp.eq.s32.totalorder %s24, 1
      %p58 = por %p56, %p57
      %p59 = scmp.ne.s32.totalorder %s50, %s51
      %p60 = scmp.eq.s32.totalorder %s24, 0
      %p61 = por %p59, %p60
      %p62 = scmp.ne.s32.totalorder %s50, %s51
      %p63 = scmp.eq.s32.totalorder %s25, 1
      %p64 = por %p62, %p63
      %p66 = scmp.ne.s32.totalorder %s51, %s65
      %p67 = scmp.eq.s32.totalorder %s25, 0
      %p68 = por %p66, %p67
      %s70 = sadd.s32 %s69, 1
      %p73 = scmp.eq.s32.totalorder %s19, 1
      %p74 = scmp.ne.s32.totalorder %s69, %s71
      %p75 = scmp.eq.s32.totalorder %s19, 0
      %p76 = por %p74, %p75
      %p77 = scmp.ne.s32.totalorder %s69, %s71
      %p78 = scmp.eq.s32.totalorder %s24, 1
      %p79 = por %p77, %p78
      %p80 = scmp.ne.s32.totalorder %s71, %s72
      %p81 = scmp.eq.s32.totalorder %s24, 0
      %p82 = por %p80, %p81
      %p83 = scmp.ne.s32.totalorder %s71, %s72
      %p84 = scmp.eq.s32.totalorder %s25, 1
      %p85 = por %p83, %p84
      %p87 = scmp.ne.s32.totalorder %s72, %s86
      %p88 = scmp.eq.s32.totalorder %s25, 0
      %p89 = por %p87, %p88
      %s91 = sadd.s32 %s90, 1
      %p94 = scmp.eq.s32.totalorder %s19, 1
      %p95 = scmp.ne.s32.totalorder %s90, %s92
      %p96 = scmp.eq.s32.totalorder %s19, 0
      %p97 = por %p95, %p96
      %p98 = scmp.ne.s32.totalorder %s90, %s92
      %p99 = scmp.eq.s32.totalorder %s24, 1
      %p100 = por %p98, %p99
      %p101 = scmp.ne.s32.totalorder %s92, %s93
      %p102 = scmp.eq.s32.totalorder %s24, 0
      %p103 = por %p101, %p102
      %p104 = scmp.ne.s32.totalorder %s92, %s93
      %p105 = scmp.eq.s32.totalorder %s25, 1
      %p106 = por %p104, %p105
      %p108 = scmp.ne.s32.totalorder %s93, %s107
      %p109 = scmp.eq.s32.totalorder %s25, 0
      %p110 = por %p108, %p109
      %s112 = sadd.s32 %s111, 1
      %p115 = scmp.eq.s32.totalorder %s19, 1
      %p116 = scmp.ne.s32.totalorder %s111, %s113
      %p117 = scmp.eq.s32.totalorder %s19, 0
      %p118 = por %p116, %p117
      %p119 = scmp.ne.s32.totalorder %s111, %s113
      %p120 = scmp.eq.s32.totalorder %s24, 1
      %p121 = por %p119, %p120
      %p122 = scmp.ne.s32.totalorder %s113, %s114
      %p123 = scmp.eq.s32.totalorder %s24, 0
      %p124 = por %p122, %p123
      %p125 = scmp.ne.s32.totalorder %s113, %s114
      %p126 = scmp.eq.s32.totalorder %s25, 1
      %p127 = por %p125, %p126
      %p129 = scmp.ne.s32.totalorder %s114, %s128
      %p130 = scmp.eq.s32.totalorder %s25, 0
      %p131 = por %p129, %p130
      %s133 = sadd.s32 %s132, 1
      %p136 = scmp.eq.s32.totalorder %s19, 1
      %p137 = scmp.ne.s32.totalorder %s132, %s134
      %p138 = scmp.eq.s32.totalorder %s19, 0
      %p139 = por %p137, %p138
      %p140 = scmp.ne.s32.totalorder %s132, %s134
      %p141 = scmp.eq.s32.totalorder %s24, 1
      %p142 = por %p140, %p141
      %p143 = scmp.ne.s32.totalorder %s134, %s135
      %p144 = scmp.eq.s32.totalorder %s24, 0
      %p145 = por %p143, %p144
      %p146 = scmp.ne.s32.totalorder %s134, %s135
      %p147 = scmp.eq.s32.totalorder %s25, 1
      %p148 = por %p146, %p147
      %p150 = scmp.ne.s32.totalorder %s135, %s149
      %p151 = scmp.eq.s32.totalorder %s25, 0
      %p152 = por %p150, %p151
      %s154 = sadd.s32 %s153, 1
      %p157 = scmp.eq.s32.totalorder %s19, 1
      %p158 = scmp.ne.s32.totalorder %s153, %s155
      %p159 = scmp.eq.s32.totalorder %s19, 0
      %p160 = por %p158, %p159
      %p161 = scmp.ne.s32.totalorder %s153, %s155
      %p162 = scmp.eq.s32.totalorder %s24, 1
      %p163 = por %p161, %p162
      %p164 = scmp.ne.s32.totalorder %s155, %s156
      %p165 = scmp.eq.s32.totalorder %s24, 0
      %p166 = por %p164, %p165
      %p167 = scmp.ne.s32.totalorder %s155, %s156
      %p168 = scmp.eq.s32.totalorder %s25, 1
      %p169 = por %p167, %p168
      %p171 = scmp.ne.s32.totalorder %s156, %s170
      %p172 = scmp.eq.s32.totalorder %s25, 0
      %p173 = por %p171, %p172
      %s174 = ssub.s32 %s19, %s26
      %p175 = scmp.eq.s32.totalorder %s174, 0
      %s177 = sadd.s32 %s176, 1
      %s178 = scalar_select %p175, %s176, %s177
      %p181 = pneg %p175
      %p182 = scmp.eq.s32.totalorder %s19, 1
      %p183 = por %p181, %p182
      %p184 = scmp.ne.s32.totalorder %s176, %s179
      %p185 = scmp.eq.s32.totalorder %s19, 0
      %p186 = por %p184, %p185
      %p187 = scmp.ne.s32.totalorder %s176, %s179
      %p188 = scmp.eq.s32.totalorder %s24, 1
      %p189 = por %p187, %p188
      %p190 = scmp.ne.s32.totalorder %s179, %s180
      %p191 = scmp.eq.s32.totalorder %s24, 0
      %p192 = por %p190, %p191
      %p193 = scmp.ne.s32.totalorder %s179, %s180
      %p194 = scmp.eq.s32.totalorder %s25, 1
      %p195 = por %p193, %p194
      %p197 = scmp.ne.s32.totalorder %s180, %s196
      %p198 = scmp.eq.s32.totalorder %s25, 0
      %p199 = por %p197, %p198
      %s200 = ssub.s32 %s19, %s26
      %p201 = scmp.eq.s32.totalorder %s200, 0
      %s203 = sadd.s32 %s202, 1
      %s204 = scalar_select %p201, %s202, %s203
      %p207 = pneg %p201
      %p208 = scmp.eq.s32.totalorder %s19, 1
      %p209 = por %p207, %p208
      %p210 = scmp.ne.s32.totalorder %s202, %s205
      %p211 = scmp.eq.s32.totalorder %s19, 0
      %p212 = por %p210, %p211
      %p213 = scmp.ne.s32.totalorder %s202, %s205
      %p214 = scmp.eq.s32.totalorder %s24, 1
      %p215 = por %p213, %p214
      %p216 = scmp.ne.s32.totalorder %s205, %s206
      %p217 = scmp.eq.s32.totalorder %s24, 0
      %p218 = por %p216, %p217
      %p219 = scmp.ne.s32.totalorder %s205, %s206
      %p220 = scmp.eq.s32.totalorder %s25, 1
      %p221 = por %p219, %p220
      %p223 = scmp.ne.s32.totalorder %s206, %s222
      %p224 = scmp.eq.s32.totalorder %s25, 0
      %p225 = por %p223, %p224
      %p226 = scmp.le.s32.totalorder 1, %s19
      %p227 = scmp.lt.s32.totalorder %s19, 3
      %p228 = pnand %p226, %p227
      %p229 = pneg %p228
      // Predicated region
      $region9: #{tpu_custom_call.1} parent=5 // pred_check
        _
      $region10: #{tpu_custom_call.1} parent=5 // pred_check_branch
        %231 = sbr.rel (%p228) target = $region12
      $region11: #{tpu_custom_call.1} parent=5 // pred_region
        %s232 = ssub.s32 %s19, 1
        // Predicated region
        $region13: #{tpu_custom_call.1} parent=11 // pred_check
          %p233 = pneg %p40
        $region14: #{tpu_custom_call.1} parent=11 // pred_check_branch
          %235 = sbr.rel (%p233) target = $region16
        $region15: #{tpu_custom_call.1} parent=11 // pred_region
          %s237 = ssub.s32 64, 64
          %238 = vsyncadd [#allocation3], %s237
          %s240 = sshll.u32 [#allocation2], 4
          %s241 = int_to_ptr.vmem [resolvable:$true] %s240
          %243 = dma.hbm_to_vmem [thread:$0]  %s0, 64, %s241, [#allocation3]
        $region16: #{tpu_custom_call.1} parent=11 // pred_fallthru
          _
        // Predicated region
        $region17: #{tpu_custom_call.1} parent=11 // pred_check
          %p244 = pneg %p61
        $region18: #{tpu_custom_call.1} parent=11 // pred_check_branch
          %246 = sbr.rel (%p244) target = $region20
        $region19: #{tpu_custom_call.1} parent=11 // pred_region
          %s248 = ssub.s32 512, 512
          %249 = vsyncadd [#allocation6], %s248
          %s250 = sshll.u32 [#allocation5], 4
          %s251 = int_to_ptr.vmem [resolvable:$true] %s250
          %256 = dma.hbm_to_vmem [thread:$0]  %s1, 512, %s251, [#allocation6], 128, 128, 8
        $region20: #{tpu_custom_call.1} parent=11 // pred_fallthru
          _
        // Predicated region
        $region21: #{tpu_custom_call.1} parent=11 // pred_check
          %p257 = pneg %p82
        $region22: #{tpu_custom_call.1} parent=11 // pred_check_branch
          %259 = sbr.rel (%p257) target = $region24
        $region23: #{tpu_custom_call.1} parent=11 // pred_region
          _
        $region24: #{tpu_custom_call.1} parent=11 // pred_fallthru
          _
        // Predicated region
        $region25: #{tpu_custom_call.1} parent=11 // pred_check
          %p260 = pneg %p103
        $region26: #{tpu_custom_call.1} parent=11 // pred_check_branch
          %262 = sbr.rel (%p260) target = $region28
        $region27: #{tpu_custom_call.1} parent=11 // pred_region
          _
        $region28: #{tpu_custom_call.1} parent=11 // pred_fallthru
          _
        // Predicated region
        $region29: #{tpu_custom_call.1} parent=11 // pred_check
          %p263 = pneg %p124
        $region30: #{tpu_custom_call.1} parent=11 // pred_check_branch
          %265 = sbr.rel (%p263) target = $region32
        $region31: #{tpu_custom_call.1} parent=11 // pred_region
          _
        $region32: #{tpu_custom_call.1} parent=11 // pred_fallthru
          _
        // Predicated region
        $region33: #{tpu_custom_call.1} parent=11 // pred_check
          %p266 = pneg %p145
        $region34: #{tpu_custom_call.1} parent=11 // pred_check_branch
          %268 = sbr.rel (%p266) target = $region36
        $region35: #{tpu_custom_call.1} parent=11 // pred_region
          _
        $region36: #{tpu_custom_call.1} parent=11 // pred_fallthru
          _
        // Predicated region
        $region37: #{tpu_custom_call.1} parent=11 // pred_check
          %p269 = pneg %p166
        $region38: #{tpu_custom_call.1} parent=11 // pred_check_branch
          %271 = sbr.rel (%p269) target = $region40
        $region39: #{tpu_custom_call.1} parent=11 // pred_region
          _
        $region40: #{tpu_custom_call.1} parent=11 // pred_fallthru
          _
      $region12: #{tpu_custom_call.1} parent=5 // pred_fallthru
        _
      %p272 = scmp.lt.s32.totalorder %s19, 2
      // Predicated region
      $region41: #{tpu_custom_call.1} parent=5 // pred_check
        %p273 = pneg %p272
      $region42: #{tpu_custom_call.1} parent=5 // pred_check_branch
        %275 = sbr.rel (%p273) target = $region44
      $region43: #{tpu_custom_call.1} parent=5 // pred_region
        // Predicated region
        $region45: #{tpu_custom_call.1} parent=43 // pred_check
          %p276 = pneg %p186
        $region46: #{tpu_custom_call.1} parent=43 // pred_check_branch
          %278 = sbr.rel (%p276) target = $region48
        $region47: #{tpu_custom_call.1} parent=43 // pred_region
          %s279 = sand.u32 %s176, 1
          %s280 = sand.u32 %s176, 1
          %s281 = smul.addr %s280, 16
          %s282 = scalar_lea.vmem [#allocation7], %s281
          %s283 = smul.addr %s19, 8
          %s284 = scalar_lea.vmem %s7, %s283
          // Predicated region
          $region49: #{tpu_custom_call.1} parent=47 // pred_check
            _
          $region50: #{tpu_custom_call.1} parent=47 // pred_check_branch
            %286 = sbr.rel (0) target = $region52
          $region51: #{tpu_custom_call.1} parent=47 // pred_region
            // Predicated region
            $region53: #{tpu_custom_call.1} parent=51 // pred_check
              _
            $region54: #{tpu_custom_call.1} parent=51 // pred_check_branch
              %288 = sbr.rel (0) target = $region56
            $region55: #{tpu_custom_call.1} parent=51 // pred_region
              // Predicated region
              $region68: #{tpu_custom_call.1} parent=55 // pred_check
                _
              $region69: #{tpu_custom_call.1} parent=55 // pred_check_branch
                %305 = sbr.rel (0) target = $region71
              $region70: #{tpu_custom_call.1} parent=55 // pred_region
                loop: start=0, step=1, limit=1
                $region72: #{tpu_custom_call.1} parent=70 // loop_pre_header
                  _
                $region73: #{tpu_custom_call.1} parent=70 // loop_header
                  %s307 = sphi 0, %s311
                  %p308 = scmp.ge.s32.totalorder %s307, 1
                  %s312 = sphi %s284, %s284
                  %s313 = sphi %s282, %s282
                $region74: #{tpu_custom_call.1} parent=70 // loop_header_branch
                  %310 = sbr.rel (%p308) target = $region78
                $region75: #{tpu_custom_call.1} parent=70 // loop_body
                  %v314 = vld [vmem:[%s312] sm:$0xff]
                  %315 = vst [vmem:[%s313] sm:$0xff] %v314
                  %v316 = vld [vmem:[%s312 + $0x10] sm:$0xff]
                  %317 = vst [vmem:[%s313 + $0x8] sm:$0xff] %v316
                $region76: #{tpu_custom_call.1} parent=70 // loop_footer
                  %s311 = sadd.s32 1, %s307
                $region77: #{tpu_custom_call.1} parent=70 // loop_footer_branch
                  %306 = sbr.rel target = $region73
                $region78: #{tpu_custom_call.1} parent=70 // loop_exit
                  _
              $region71: #{tpu_custom_call.1} parent=55 // pred_fallthru
                _
              // Predicated region
              $region79: #{tpu_custom_call.1} parent=55 // pred_check
                _
              $region80: #{tpu_custom_call.1} parent=55 // pred_check_branch
                %319 = sbr.rel target = $region82
              $region81: #{tpu_custom_call.1} parent=55 // pred_region
                _
              $region82: #{tpu_custom_call.1} parent=55 // pred_fallthru
                _
            $region56: #{tpu_custom_call.1} parent=51 // pred_fallthru
              _
            // Predicated region
            $region57: #{tpu_custom_call.1} parent=51 // pred_check
              _
            $region58: #{tpu_custom_call.1} parent=51 // pred_check_branch
              %290 = sbr.rel target = $region60
            $region59: #{tpu_custom_call.1} parent=51 // pred_region
              loop: start=0, step=1, limit=1
              $region61: #{tpu_custom_call.1} parent=59 // loop_pre_header
                _
              $region62: #{tpu_custom_call.1} parent=59 // loop_header
                %s293 = sphi 0, %s297
                %p294 = scmp.ge.s32.totalorder %s293, 1
                %s298 = sphi %s284, %s284
                %s299 = sphi %s282, %s282
              $region63: #{tpu_custom_call.1} parent=59 // loop_header_branch
                %296 = sbr.rel (%p294) target = $region67
              $region64: #{tpu_custom_call.1} parent=59 // loop_body
                %v300 = vld [vmem:[%s298] sm:$0xff]
                %301 = vst [vmem:[%s299] sm:$0xff] %v300
                %v302 = vld [vmem:[%s298 + $0x10] sm:$0xff]
                %303 = vst [vmem:[%s299 + $0x8] sm:$0xff] %v302
              $region65: #{tpu_custom_call.1} parent=59 // loop_footer
                %s297 = sadd.s32 1, %s293
              $region66: #{tpu_custom_call.1} parent=59 // loop_footer_branch
                %292 = sbr.rel target = $region62
              $region67: #{tpu_custom_call.1} parent=59 // loop_exit
                _
            $region60: #{tpu_custom_call.1} parent=51 // pred_fallthru
              _
          $region52: #{tpu_custom_call.1} parent=47 // pred_fallthru
            _
          %320 = vnop
        $region48: #{tpu_custom_call.1} parent=43 // pred_fallthru
          _
      $region44: #{tpu_custom_call.1} parent=5 // pred_fallthru
        _
      %p321 = scmp.le.s32.totalorder 1, %s19
      %p322 = scmp.lt.s32.totalorder %s19, 3
      %p323 = pnand %p321, %p322
      %p324 = pneg %p323
      // Predicated region
      $region83: #{tpu_custom_call.1} parent=5 // pred_check
        _
      $region84: #{tpu_custom_call.1} parent=5 // pred_check_branch
        %326 = sbr.rel (%p323) target = $region86
      $region85: #{tpu_custom_call.1} parent=5 // pred_region
        %s327 = ssub.s32 %s19, 1
        // Predicated region
        $region87: #{tpu_custom_call.1} parent=85 // pred_check
          %p328 = pneg %p40
        $region88: #{tpu_custom_call.1} parent=85 // pred_check_branch
          %330 = sbr.rel (%p328) target = $region90
        $region89: #{tpu_custom_call.1} parent=85 // pred_region
          %331 = dma.done [#allocation3], 64
        $region90: #{tpu_custom_call.1} parent=85 // pred_fallthru
          _
        // Predicated region
        $region91: #{tpu_custom_call.1} parent=85 // pred_check
          %p332 = pneg %p61
        $region92: #{tpu_custom_call.1} parent=85 // pred_check_branch
          %334 = sbr.rel (%p332) target = $region94
        $region93: #{tpu_custom_call.1} parent=85 // pred_region
          %335 = dma.done [#allocation6], 512
        $region94: #{tpu_custom_call.1} parent=85 // pred_fallthru
          _
        %s336 = sand.u32 %s179, 1
        %s337 = sand.u32 %s179, 1
        %s338 = smul.addr %s337, 16
        %s339 = scalar_lea.vmem [#allocation7], %s338
        // Predicated region
        $region95: #{tpu_custom_call.1} parent=85 // pred_check
          %p340 = pneg %p192
        $region96: #{tpu_custom_call.1} parent=85 // pred_check_branch
          %342 = sbr.rel (%p340) target = $region98
        $region97: #{tpu_custom_call.1} parent=85 // pred_region
          _
        $region98: #{tpu_custom_call.1} parent=85 // pred_fallthru
          _
        %p343 = pneg %p40
        %p344 = pneg %p37
        %p345 = pneg %p61
        %p346 = pneg %p58
        %p347 = pneg %p82
        %p348 = pneg %p79
        %p349 = pneg %p103
        %p350 = pneg %p100
        %p351 = pneg %p124
        %p352 = pneg %p121
        %p353 = pneg %p145
        %p354 = pneg %p142
        %p355 = pneg %p166
        %p356 = pneg %p163
        %s357 = sand.u32 %s179, 1
        %s358 = sand.u32 %s179, 1
        %s359 = smul.addr %s358, 16
        %s360 = scalar_lea.vmem [#allocation7], %s359
        %p361 = pneg %p192
        %p362 = pneg %p189
        %p363 = pneg %p218
        %p364 = pneg %p215
        %s365 = sand.u32 %s205, 1
        %s366 = scalar_lea.sflag [#allocation4], %s365
        %s367 = sand.u32 %s205, 1
        %s368 = smul.addr %s367, 4
        %s369 = scalar_lea.vmem [#allocation8], %s368
        %v370 = vld [vmem:[#allocation2] sm:$0xf]
        %v371 = vld [vmem:[#allocation5] sm:$0xff]
        %v372 = vld [vmem:[#allocation5 + $0x8] sm:$0xff]
        %v373 = vld [vmem:[#allocation5 + $0x10] sm:$0xff]
        %v374 = vld [vmem:[#allocation5 + $0x18] sm:$0xff]
        %v375 = vld [vmem:[%s2] sm:$0x1]
        %v377 = vlaneseq
        %v378 = vshrl.u32 %v377, 7
        %v379 = vsub.s32 0, %v378
        %v380 = vrot.slane %v375, %v379
        %vm382 = vcmask 261120
        %v384 = vsel %vm382, %v370, 0
        %386 = vmatprep.subr.mxu0 0.0
        %387 = vmatpush1.msra.mxu0 %v371
        %388 = vmatprep.subr.mxu0 0.0
        %389 = vmatpush1.msra.mxu0 %v372
        %390 = vmatprep.subr.mxu0 0.0
        %391 = vmatpush1.msra.mxu0 %v373
        %392 = vmatprep.subr.mxu0 0.0
        %393 = vmatpush1.msra.mxu0 %v374
        %394 = vmatprep.subr.mxu0 0.0
        %395 = vmatpush1.msra.mxu0 0.0
        %396 = vmatprep.subr.mxu0 0.0
        %397 = vmatpush1.msra.mxu0 0.0
        %398 = vmatprep.subr.mxu0 0.0
        %399 = vmatpush1.msra.mxu0 0.0
        %400 = vmatprep.subr.mxu0 0.0
        %401 = vmatpush1.msra.mxu0 0.0
        %402 = vmatprep.subr.mxu0 0.0
        %403 = vmatpush1.msra.mxu0 0.0
        %404 = vmatprep.subr.mxu0 0.0
        %405 = vmatpush1.msra.mxu0 0.0
        %406 = vmatprep.subr.mxu0 0.0
        %407 = vmatpush1.msra.mxu0 0.0
        %408 = vmatprep.subr.mxu0 0.0
        %409 = vmatpush1.msra.mxu0 0.0
        %410 = vmatprep.subr.mxu0 0.0
        %411 = vmatpush1.msra.mxu0 0.0
        %412 = vmatprep.subr.mxu0 0.0
        %413 = vmatpush1.msra.mxu0 0.0
        %414 = vmatprep.subr.mxu0 0.0
        %415 = vmatpush1.msra.mxu0 0.0
        %416 = vmatprep.subr.mxu0 0.0
        %417 = vmatpush1.msra.mxu0 0.0
        %418 = vmatprep.subr.mxu0 0.0
        %419 = vmatpush1.msra.mxu0 0.0
        %420 = vmatprep.subr.mxu0 0.0
        %421 = vmatpush1.msra.mxu0 0.0
        %422 = vmatprep.subr.mxu0 0.0
        %423 = vmatpush1.msra.mxu0 0.0
        %424 = vmatprep.subr.mxu0 0.0
        %425 = vmatpush1.msra.mxu0 0.0
        %426 = vmatprep.subr.mxu0 0.0
        %427 = vmatpush1.msra.mxu0 0.0
        %428 = vmatprep.subr.mxu0 0.0
        %429 = vmatpush1.msra.mxu0 0.0
        %430 = vmatprep.subr.mxu0 0.0
        %431 = vmatpush1.msra.mxu0 0.0
        %432 = vmatprep.subr.mxu0 0.0
        %433 = vmatpush1.msra.mxu0 0.0
        %434 = vmatprep.subr.mxu0 0.0
        %435 = vmatpush1.msra.mxu0 0.0
        %436 = vmatprep.subr.mxu0 0.0
        %437 = vmatpush1.msra.mxu0 0.0
        %438 = vmatprep.subr.mxu0 0.0
        %439 = vmatpush1.msra.mxu0 0.0
        %440 = vmatprep.subr.mxu0 0.0
        %441 = vmatpush1.msra.mxu0 0.0
        %442 = vmatprep.subr.mxu0 0.0
        %443 = vmatpush1.msra.mxu0 0.0
        %444 = vmatprep.subr.mxu0 0.0
        %445 = vmatpush1.msra.mxu0 0.0
        %446 = vmatprep.subr.mxu0 0.0
        %447 = vmatpush1.msra.mxu0 0.0
        %448 = vmatprep.subr.mxu0 0.0
        %449 = vmatpush1.msra.mxu0 0.0
        %450 = vmatprep.mubr.f32.mxu0 0.0
        %451 = vmatmul.mubr.f32.gmra.mrb[0].mxu0 %v384
        %v452 = vpop.f32.mrb[0].mxu0
        %v453 = vadd.f32 %v380, %v452
        %v454 = vpop.f32.mrb[0].mxu0
        %455 = vdwg.mxu0
        %v456 = vmax.f32 %v453, 0.0
        %v457 = vld [vmem:[%s3] sm:$0xff]
        %v458 = vld [vmem:[%s3 + $0x8] sm:$0xff]
        %v459 = vld [vmem:[%s3 + $0x10] sm:$0xff]
        %v460 = vld [vmem:[%s3 + $0x18] sm:$0xff]
        %v461 = vld [vmem:[%s3 + $0x20] sm:$0xff]
        %v462 = vld [vmem:[%s3 + $0x28] sm:$0xff]
        %v463 = vld [vmem:[%s3 + $0x30] sm:$0xff]
        %v464 = vld [vmem:[%s3 + $0x38] sm:$0xff]
        %v465 = vld [vmem:[%s4] sm:$0x1]
        %v467 = vlaneseq
        %v468 = vshrl.u32 %v467, 7
        %v469 = vsub.s32 0, %v468
        %v470 = vrot.slane %v465, %v469
        %vm472 = vcmask 523264
        %v474 = vsel %vm472, %v456, 0
        %476 = vmatprep.subr.mxu0 0.0
        %477 = vmatpush1.msra.mxu0 %v457
        %478 = vmatprep.subr.mxu0 0.0
        %479 = vmatpush1.msra.mxu0 %v458
        %480 = vmatprep.subr.mxu0 0.0
        %481 = vmatpush1.msra.mxu0 %v459
        %482 = vmatprep.subr.mxu0 0.0
        %483 = vmatpush1.msra.mxu0 %v460
        %484 = vmatprep.subr.mxu0 0.0
        %485 = vmatpush1.msra.mxu0 %v461
        %486 = vmatprep.subr.mxu0 0.0
        %487 = vmatpush1.msra.mxu0 %v462
        %488 = vmatprep.subr.mxu0 0.0
        %489 = vmatpush1.msra.mxu0 %v463
        %490 = vmatprep.subr.mxu0 0.0
        %491 = vmatpush1.msra.mxu0 %v464
        %492 = vmatprep.subr.mxu0 0.0
        %493 = vmatpush1.msra.mxu0 0.0
        %494 = vmatprep.subr.mxu0 0.0
        %495 = vmatpush1.msra.mxu0 0.0
        %496 = vmatprep.subr.mxu0 0.0
        %497 = vmatpush1.msra.mxu0 0.0
        %498 = vmatprep.subr.mxu0 0.0
        %499 = vmatpush1.msra.mxu0 0.0
        %500 = vmatprep.subr.mxu0 0.0
        %501 = vmatpush1.msra.mxu0 0.0
        %502 = vmatprep.subr.mxu0 0.0
        %503 = vmatpush1.msra.mxu0 0.0
        %504 = vmatprep.subr.mxu0 0.0
        %505 = vmatpush1.msra.mxu0 0.0
        %506 = vmatprep.subr.mxu0 0.0
        %507 = vmatpush1.msra.mxu0 0.0
        %508 = vmatprep.subr.mxu0 0.0
        %509 = vmatpush1.msra.mxu0 0.0
        %510 = vmatprep.subr.mxu0 0.0
        %511 = vmatpush1.msra.mxu0 0.0
        %512 = vmatprep.subr.mxu0 0.0
        %513 = vmatpush1.msra.mxu0 0.0
        %514 = vmatprep.subr.mxu0 0.0
        %515 = vmatpush1.msra.mxu0 0.0
        %516 = vmatprep.subr.mxu0 0.0
        %517 = vmatpush1.msra.mxu0 0.0
        %518 = vmatprep.subr.mxu0 0.0
        %519 = vmatpush1.msra.mxu0 0.0
        %520 = vmatprep.subr.mxu0 0.0
        %521 = vmatpush1.msra.mxu0 0.0
        %522 = vmatprep.subr.mxu0 0.0
        %523 = vmatpush1.msra.mxu0 0.0
        %524 = vmatprep.subr.mxu0 0.0
        %525 = vmatpush1.msra.mxu0 0.0
        %526 = vmatprep.subr.mxu0 0.0
        %527 = vmatpush1.msra.mxu0 0.0
        %528 = vmatprep.subr.mxu0 0.0
        %529 = vmatpush1.msra.mxu0 0.0
        %530 = vmatprep.subr.mxu0 0.0
        %531 = vmatpush1.msra.mxu0 0.0
        %532 = vmatprep.subr.mxu0 0.0
        %533 = vmatpush1.msra.mxu0 0.0
        %534 = vmatprep.subr.mxu0 0.0
        %535 = vmatpush1.msra.mxu0 0.0
        %536 = vmatprep.subr.mxu0 0.0
        %537 = vmatpush1.msra.mxu0 0.0
        %538 = vmatprep.subr.mxu0 0.0
        %539 = vmatpush1.msra.mxu0 0.0
        %540 = vmatprep.mubr.f32.mxu0 0.0
        %541 = vmatmul.mubr.f32.gmra.mrb[0].mxu0 %v474
        %v542 = vpop.f32.mrb[0].mxu0
        %v543 = vadd.f32 %v470, %v542
        %v544 = vpop.f32.mrb[0].mxu0
        %545 = vdwg.mxu0
        %v546 = vmax.f32 %v543, 0.0
        %v547 = vld [vmem:[%s5] sm:$0xff]
        %v548 = vld [vmem:[%s5 + $0x8] sm:$0xff]
        %v549 = vld [vmem:[%s5 + $0x10] sm:$0xff]
        %v550 = vld [vmem:[%s5 + $0x18] sm:$0xff]
        %v551 = vld [vmem:[%s5 + $0x20] sm:$0xff]
        %v552 = vld [vmem:[%s5 + $0x28] sm:$0xff]
        %v553 = vld [vmem:[%s5 + $0x30] sm:$0xff]
        %v554 = vld [vmem:[%s5 + $0x38] sm:$0xff]
        %v555 = vld [vmem:[%s6] sm:$0x1]
        %v557 = vlaneseq
        %v558 = vshrl.u32 %v557, 7
        %v559 = vsub.s32 0, %v558
        %v560 = vrot.slane %v555, %v559
        %v563 = vsel %vm472, %v546, 0
        %565 = vmatprep.subr.mxu0 0.0
        %566 = vmatpush1.msra.mxu0 %v547
        %567 = vmatprep.subr.mxu0 0.0
        %568 = vmatpush1.msra.mxu0 %v548
        %569 = vmatprep.subr.mxu0 0.0
        %570 = vmatpush1.msra.mxu0 %v549
        %571 = vmatprep.subr.mxu0 0.0
        %572 = vmatpush1.msra.mxu0 %v550
        %573 = vmatprep.subr.mxu0 0.0
        %574 = vmatpush1.msra.mxu0 %v551
        %575 = vmatprep.subr.mxu0 0.0
        %576 = vmatpush1.msra.mxu0 %v552
        %577 = vmatprep.subr.mxu0 0.0
        %578 = vmatpush1.msra.mxu0 %v553
        %579 = vmatprep.subr.mxu0 0.0
        %580 = vmatpush1.msra.mxu0 %v554
        %581 = vmatprep.subr.mxu0 0.0
        %582 = vmatpush1.msra.mxu0 0.0
        %583 = vmatprep.subr.mxu0 0.0
        %584 = vmatpush1.msra.mxu0 0.0
        %585 = vmatprep.subr.mxu0 0.0
        %586 = vmatpush1.msra.mxu0 0.0
        %587 = vmatprep.subr.mxu0 0.0
        %588 = vmatpush1.msra.mxu0 0.0
        %589 = vmatprep.subr.mxu0 0.0
        %590 = vmatpush1.msra.mxu0 0.0
        %591 = vmatprep.subr.mxu0 0.0
        %592 = vmatpush1.msra.mxu0 0.0
        %593 = vmatprep.subr.mxu0 0.0
        %594 = vmatpush1.msra.mxu0 0.0
        %595 = vmatprep.subr.mxu0 0.0
        %596 = vmatpush1.msra.mxu0 0.0
        %597 = vmatprep.subr.mxu0 0.0
        %598 = vmatpush1.msra.mxu0 0.0
        %599 = vmatprep.subr.mxu0 0.0
        %600 = vmatpush1.msra.mxu0 0.0
        %601 = vmatprep.subr.mxu0 0.0
        %602 = vmatpush1.msra.mxu0 0.0
        %603 = vmatprep.subr.mxu0 0.0
        %604 = vmatpush1.msra.mxu0 0.0
        %605 = vmatprep.subr.mxu0 0.0
        %606 = vmatpush1.msra.mxu0 0.0
        %607 = vmatprep.subr.mxu0 0.0
        %608 = vmatpush1.msra.mxu0 0.0
        %609 = vmatprep.subr.mxu0 0.0
        %610 = vmatpush1.msra.mxu0 0.0
        %611 = vmatprep.subr.mxu0 0.0
        %612 = vmatpush1.msra.mxu0 0.0
        %613 = vmatprep.subr.mxu0 0.0
        %614 = vmatpush1.msra.mxu0 0.0
        %615 = vmatprep.subr.mxu0 0.0
        %616 = vmatpush1.msra.mxu0 0.0
        %617 = vmatprep.subr.mxu0 0.0
        %618 = vmatpush1.msra.mxu0 0.0
        %619 = vmatprep.subr.mxu0 0.0
        %620 = vmatpush1.msra.mxu0 0.0
        %621 = vmatprep.subr.mxu0 0.0
        %622 = vmatpush1.msra.mxu0 0.0
        %623 = vmatprep.subr.mxu0 0.0
        %624 = vmatpush1.msra.mxu0 0.0
        %625 = vmatprep.subr.mxu0 0.0
        %626 = vmatpush1.msra.mxu0 0.0
        %627 = vmatprep.subr.mxu0 0.0
        %628 = vmatpush1.msra.mxu0 0.0
        %629 = vmatprep.mubr.f32.mxu0 0.0
        %630 = vmatmul.mubr.f32.gmra.mrb[0].mxu0 %v563
        %v631 = vpop.f32.mrb[0].mxu0
        %v632 = vadd.f32 %v560, %v631
        %v633 = vpop.f32.mrb[0].mxu0
        %634 = vdwg.mxu0
        %v635 = vld [vmem:[%s339] sm:$0xff]
        %v636 = vld [vmem:[%s339 + $0x8] sm:$0xff]
        %vm637 = vcmask 130048
        %v639 = vsel %vm637, %v632, 0
        %641 = vmatprep.subr.mxu0 0.0
        %642 = vmatpush1.msra.mxu0 %v635
        %643 = vmatprep.subr.mxu0 0.0
        %644 = vmatpush1.msra.mxu0 %v636
        %645 = vmatprep.subr.mxu0 0.0
        %646 = vmatpush1.msra.mxu0 0.0
        %647 = vmatprep.subr.mxu0 0.0
        %648 = vmatpush1.msra.mxu0 0.0
        %649 = vmatprep.subr.mxu0 0.0
        %650 = vmatpush1.msra.mxu0 0.0
        %651 = vmatprep.subr.mxu0 0.0
        %652 = vmatpush1.msra.mxu0 0.0
        %653 = vmatprep.subr.mxu0 0.0
        %654 = vmatpush1.msra.mxu0 0.0
        %655 = vmatprep.subr.mxu0 0.0
        %656 = vmatpush1.msra.mxu0 0.0
        %657 = vmatprep.subr.mxu0 0.0
        %658 = vmatpush1.msra.mxu0 0.0
        %659 = vmatprep.subr.mxu0 0.0
        %660 = vmatpush1.msra.mxu0 0.0
        %661 = vmatprep.subr.mxu0 0.0
        %662 = vmatpush1.msra.mxu0 0.0
        %663 = vmatprep.subr.mxu0 0.0
        %664 = vmatpush1.msra.mxu0 0.0
        %665 = vmatprep.subr.mxu0 0.0
        %666 = vmatpush1.msra.mxu0 0.0
        %667 = vmatprep.subr.mxu0 0.0
        %668 = vmatpush1.msra.mxu0 0.0
        %669 = vmatprep.subr.mxu0 0.0
        %670 = vmatpush1.msra.mxu0 0.0
        %671 = vmatprep.subr.mxu0 0.0
        %672 = vmatpush1.msra.mxu0 0.0
        %673 = vmatprep.subr.mxu0 0.0
        %674 = vmatpush1.msra.mxu0 0.0
        %675 = vmatprep.subr.mxu0 0.0
        %676 = vmatpush1.msra.mxu0 0.0
        %677 = vmatprep.subr.mxu0 0.0
        %678 = vmatpush1.msra.mxu0 0.0
        %679 = vmatprep.subr.mxu0 0.0
        %680 = vmatpush1.msra.mxu0 0.0
        %681 = vmatprep.subr.mxu0 0.0
        %682 = vmatpush1.msra.mxu0 0.0
        %683 = vmatprep.subr.mxu0 0.0
        %684 = vmatpush1.msra.mxu0 0.0
        %685 = vmatprep.subr.mxu0 0.0
        %686 = vmatpush1.msra.mxu0 0.0
        %687 = vmatprep.subr.mxu0 0.0
        %688 = vmatpush1.msra.mxu0 0.0
        %689 = vmatprep.subr.mxu0 0.0
        %690 = vmatpush1.msra.mxu0 0.0
        %691 = vmatprep.subr.mxu0 0.0
        %692 = vmatpush1.msra.mxu0 0.0
        %693 = vmatprep.subr.mxu0 0.0
        %694 = vmatpush1.msra.mxu0 0.0
        %695 = vmatprep.subr.mxu0 0.0
        %696 = vmatpush1.msra.mxu0 0.0
        %697 = vmatprep.subr.mxu0 0.0
        %698 = vmatpush1.msra.mxu0 0.0
        %699 = vmatprep.subr.mxu0 0.0
        %700 = vmatpush1.msra.mxu0 0.0
        %701 = vmatprep.subr.mxu0 0.0
        %702 = vmatpush1.msra.mxu0 0.0
        %703 = vmatprep.subr.mxu0 0.0
        %704 = vmatpush1.msra.mxu0 0.0
        %705 = vmatprep.mubr.f32.mxu0 0.0
        %706 = vmatmul.mubr.f32.gmra.mrb[0].mxu0 %v639
        %v707 = vpop.f32.mrb[0].mxu0
        %v708 = vadd.f32 0.0, %v707
        %v709 = vpop.f32.mrb[0].mxu0
        %710 = vdwg.mxu0
        %711 = vst [vmem:[%s369] sm:$0xf] %v708
        %s712 = sand.u32 %s205, 1
        %s713 = scalar_lea.sflag [#allocation4], %s712
        %s714 = sand.u32 %s205, 1
        %s715 = smul.addr %s714, 4
        %s716 = scalar_lea.vmem [#allocation8], %s715
        // Predicated region
        $region99: #{tpu_custom_call.1} parent=85 // pred_check
          %p717 = pneg %p215
        $region100: #{tpu_custom_call.1} parent=85 // pred_check_branch
          %719 = sbr.rel (%p717) target = $region102
        $region101: #{tpu_custom_call.1} parent=85 // pred_region
          %s721 = ssub.s32 64, 64
          %722 = vsyncadd %s713, %s721
          %s723 = smul.addr %s24, 64
          %s724 = scalar_lea.hbm %s8, %s723
          %s726 = sshll.u32 %s716, 4
          %s727 = int_to_ptr.vmem [resolvable:$true] %s726
          %729 = dma.vmem_to_hbm [thread:$0]  %s727, 64, %s724, %s713
        $region102: #{tpu_custom_call.1} parent=85 // pred_fallthru
          _
      $region86: #{tpu_custom_call.1} parent=5 // pred_fallthru
        _
      %p730 = scmp.le.s32.totalorder 2, %s19
      // Predicated region
      $region103: #{tpu_custom_call.1} parent=5 // pred_check
        %p731 = pneg %p730
      $region104: #{tpu_custom_call.1} parent=5 // pred_check_branch
        %733 = sbr.rel (%p731) target = $region106
      $region105: #{tpu_custom_call.1} parent=5 // pred_region
        %s734 = ssub.s32 %s19, 2
        // Predicated region
        $region107: #{tpu_custom_call.1} parent=105 // pred_check
          %p735 = pneg %p221
        $region108: #{tpu_custom_call.1} parent=105 // pred_check_branch
          %737 = sbr.rel (%p735) target = $region110
        $region109: #{tpu_custom_call.1} parent=105 // pred_region
          %s738 = sand.u32 %s206, 1
          %s739 = scalar_lea.sflag [#allocation4], %s738
          %s740 = sand.u32 %s206, 1
          %s741 = smul.addr %s740, 4
          %s742 = scalar_lea.vmem [#allocation8], %s741
          %743 = dma.done %s739, 64
        $region110: #{tpu_custom_call.1} parent=105 // pred_fallthru
          _
      $region106: #{tpu_custom_call.1} parent=5 // pred_fallthru
        _
    $region6: #{tpu_custom_call.1} parent=1 // loop_footer
      %s23 = sadd.s32 1, %s19
    $region7: #{tpu_custom_call.1} parent=1 // loop_footer_branch
      %18 = sbr.rel target = $region3
    $region8: #{tpu_custom_call.1} parent=1 // loop_exit
      _
    %744 = vsyncpa [#allocation3], 1
    %s745 = scalar_lea.sflag [#allocation3], 1
    %746 = vsyncpa %s745, 1
    %747 = vsyncpa [#allocation6], 1
    %748 = vsyncpa [#allocation4], 1
    %s749 = scalar_lea.sflag [#allocation4], 1
    %750 = vsyncpa %s749, 1

</llo_original>
